<compile_context>
chip_gen: v6e
topology: v6e:2x2x1
jax: 0.10.0
libtpu: 0.0.40
codegen_flags: <defaults>
</compile_context>

<pallas_src>
import functools

import jax
import jax.numpy as jnp
from jax.experimental import pallas as pl
from jax.experimental.pallas import tpu as pltpu


def _round_up(n, m):
    return ((n + m - 1) // m) * m


def fc_model_kernel(x_ref, w1_ref, b1_ref, w2_ref, b2_ref, w3_ref, b3_ref,
                    alpha_ref, o_ref, *, chunk, num_chunks, mm_dtype, act_dtype):
    # Weights / biases are tiny and VMEM resident; load once per grid step.
    w1 = w1_ref[...]                                  # (in_plane, 128) mm_dtype
    b1 = b1_ref[...]                                  # (1, 128) f32
    w2 = w2_ref[...]                                  # (128, 32)  mm_dtype
    b2 = b2_ref[...]                                  # (1, 32)   f32
    w3 = w3_ref[...]                                  # (1, 32)   mm_dtype (row)
    alpha = alpha_ref[0].astype(act_dtype)            # PReLU slope (SMEM scalar)
    b3 = b3_ref[0]                                    # f32 scalar (SMEM)

    # Fully-unrolled chunk loop over the batch tile: static slice offsets, bounded
    # per-chunk register footprint, good LLO scheduling visibility.
    for c in range(num_chunks):
        r0 = c * chunk
        xc = x_ref[r0:r0 + chunk, :].astype(mm_dtype)                  # f32 -> bf16 in-kernel

        # fc1 (MXU, f32 accumulation) + bias in f32, PReLU in act_dtype
        h1 = jnp.dot(xc, w1, preferred_element_type=jnp.float32) + b1  # (chunk, 128) f32
        h1 = h1.astype(act_dtype)
        h1 = jnp.where(h1 > 0, h1, h1 * alpha)

        # fc2 (MXU) + ReLU
        h2 = jnp.dot(h1.astype(mm_dtype), w2,
                     preferred_element_type=jnp.float32) + b2          # (chunk, 32) f32
        h2 = jnp.maximum(h2, 0.0).astype(mm_dtype)

        # out layer on the MXU, computed transposed so the result is lane-dense:
        #   (1, 32) contracted with (chunk, 32) on dim 1  ->  (1, chunk)
        o = jax.lax.dot_general(w3, h2, (((1,), (1,)), ((), ())),
                                preferred_element_type=jnp.float32)    # (1, chunk) f32
        o_ref[:, r0:r0 + chunk] = jnp.maximum(o + b3, 0.0)


def fc_model_forward(x, params, *, tile_b=2048, use_bf16=True, bf16_activations=None):
    """x: (B, in_plane) f32 (left in HBM as-is). params: dict of weights/biases/alpha."""
    B, in_plane = x.shape
    if x.dtype != jnp.float32:
        x = x.astype(jnp.float32)

    mm_dtype = jnp.bfloat16 if use_bf16 else jnp.float32
    if bf16_activations is None:
        bf16_activations = use_bf16          # NOTE: set False on v5e (no bf16 VPU)
    act_dtype = jnp.bfloat16 if bf16_activations else jnp.float32

    CHUNK = 256
    tile_b = max(CHUNK, min(int(tile_b), _round_up(B, CHUNK)))
    tile_b = _round_up(tile_b, CHUNK)
    num_tiles = int(pl.cdiv(B, tile_b))      # no wrapper-side pad; tail block reads OOB
    num_chunks = tile_b // CHUNK             # rows are independent, sliced off below
    b_pad = num_tiles * tile_b

    # Weight casts are a one-time ~20 KB wrapper cost (unlike x, which stays f32).
    w1 = params["w1"].astype(mm_dtype)                     # (in_plane, 128)
    w2 = params["w2"].astype(mm_dtype)                     # (128, 32)
    w3 = params["w3"].reshape(1, 32).astype(mm_dtype)      # (1, 32) row
    b1 = params["b1"].reshape(1, 128).astype(jnp.float32)
    b2 = params["b2"].reshape(1, 32).astype(jnp.float32)
    b3 = params["b3"].reshape(1).astype(jnp.float32)       # SMEM scalar
    alpha = params["alpha"].reshape(1).astype(jnp.float32)  # SMEM scalar

    const2 = lambda i: (0, 0)
    smem = pl.BlockSpec(memory_space=pltpu.MemorySpace.SMEM)

    wbytes = (w1.size + w2.size + w3.size) * jnp.dtype(mm_dtype).itemsize
    cost = pl.CostEstimate(
        flops=2 * b_pad * (in_plane * 128 + 128 * 32 + 32),
        transcendentals=0,
        bytes_accessed=b_pad * in_plane * 4 + b_pad * 4 + wbytes + (128 + 32 + 2) * 4,
    )

    kern = functools.partial(fc_model_kernel, chunk=CHUNK, num_chunks=num_chunks,
                             mm_dtype=mm_dtype, act_dtype=act_dtype)

    out = pl.pallas_call(
        kern,
        out_shape=jax.ShapeDtypeStruct((1, b_pad), jnp.float32),   # lane-dense output
        grid=(num_tiles,),
        in_specs=[
            pl.BlockSpec((tile_b, in_plane), lambda i: (i, 0)),    # x streamed, f32
            pl.BlockSpec((in_plane, 128), const2),                 # w1 (resident)
            pl.BlockSpec((1, 128), const2),                        # b1
            pl.BlockSpec((128, 32), const2),                       # w2
            pl.BlockSpec((1, 32), const2),                         # b2
            pl.BlockSpec((1, 32), const2),                         # w3 row
            smem,                                                  # b3 (scalar)
            smem,                                                  # alpha (scalar)
        ],
        out_specs=pl.BlockSpec((1, tile_b), lambda i: (0, i)),
        compiler_params=pltpu.CompilerParams(
            dimension_semantics=("parallel",),
            vmem_limit_bytes=32 * 1024 * 1024,   # safe on v7x's 64 MiB VMEM too
        ),
        cost_estimate=cost,
    )(x, w1, b1, w2, b2, w3, b3, alpha)

    # Drop the tail block's garbage rows and restore the (B, 1) column shape.
    return out.reshape(-1)[:B].reshape(B, 1)


def init_params(key, in_plane):
    """Deterministic parameter init matching the module's shapes."""
    ks = jax.random.split(key, 6)

    def lin(kw, kb, fan_in, fan_out):
        bound = 1.0 / jnp.sqrt(fan_in)
        w = jax.random.uniform(kw, (fan_in, fan_out), jnp.float32, -bound, bound)
        b = jax.random.uniform(kb, (1, fan_out), jnp.float32, -bound, bound)
        return w, b

    w1, b1 = lin(ks[0], ks[1], in_plane, 128)
    w2, b2 = lin(ks[2], ks[3], 128, 32)
    w3, b3 = lin(ks[4], ks[5], 32, 1)
    alpha = jnp.full((1, 1), 0.25, jnp.float32)   # nn.PReLU() default init
    return dict(w1=w1, b1=b1, w2=w2, b2=b2, w3=w3, b3=b3, alpha=alpha)


def reference_forward(x, p):
    h1 = x @ p["w1"] + p["b1"]
    h1 = jnp.where(h1 > 0, h1, p["alpha"][0, 0] * h1)
    h2 = jnp.maximum(h1 @ p["w2"] + p["b2"], 0.0)
    return jnp.maximum(h2 @ p["w3"] + p["b3"], 0.0)


if __name__ == "__main__":
    in_plane = 32
    batch = 300   # deliberately NOT a multiple of tile/chunk -> exercises the OOB tail

    key = jax.random.PRNGKey(0)
    kx, kp = jax.random.split(key)
    x = jax.random.normal(kx, (batch, in_plane), jnp.float32)
    params = init_params(kp, in_plane)

    ref = reference_forward(x, params)

    # f32 path, small tile -> multi-step grid + non-divisible tail: tight check.
    out_f32 = jax.block_until_ready(
        fc_model_forward(x, params, tile_b=256, use_bf16=False))
    assert out_f32.shape == (batch, 1)
    assert jnp.allclose(out_f32, ref, atol=1e-5, rtol=1e-5)

    # bf16 path (default), default tiling -> single grid step, multi-chunk loop.
    out_bf16 = jax.block_until_ready(
        fc_model_forward(x, params, use_bf16=True))
    assert out_bf16.shape == (batch, 1)
    assert jnp.allclose(out_bf16, ref, atol=5e-2, rtol=5e-2)

    print("KERNEL_OK")
</pallas_src>

<mosaic_0001>
module attributes {stable_mosaic.version = 11 : i64} {
  func.func @fc_model_kernel(%arg0: i32, %arg1: memref<256x32xf32, #tpu.memory_space<vmem>>, %arg2: memref<32x128xf32, #tpu.memory_space<vmem>>, %arg3: memref<1x128xf32, #tpu.memory_space<vmem>>, %arg4: memref<128x32xf32, #tpu.memory_space<vmem>>, %arg5: memref<1x32xf32, #tpu.memory_space<vmem>>, %arg6: memref<1x32xf32, #tpu.memory_space<vmem>>, %arg7: memref<1xf32, #tpu.memory_space<smem>>, %arg8: memref<1xf32, #tpu.memory_space<smem>>, %arg9: memref<1x256xf32, #tpu.memory_space<vmem>>) attributes {dimension_semantics = [#tpu.dimension_semantics<parallel>], iteration_bounds = array<i64: 2>, scalar_prefetch = 0 : i64, scratch_operands = 0 : i64, tpu.core_type = #tpu.core_type<tc>, window_params = [{transform_indices = @transform_0, window_bounds = array<i64: 256, 32>}, {pipeline_mode = #tpu.pipeline_mode<synchronous>, transform_indices = @transform_1, window_bounds = array<i64: 32, 128>}, {pipeline_mode = #tpu.pipeline_mode<synchronous>, transform_indices = @transform_2, window_bounds = array<i64: 1, 128>}, {pipeline_mode = #tpu.pipeline_mode<synchronous>, transform_indices = @transform_3, window_bounds = array<i64: 128, 32>}, {pipeline_mode = #tpu.pipeline_mode<synchronous>, transform_indices = @transform_4, window_bounds = array<i64: 1, 32>}, {pipeline_mode = #tpu.pipeline_mode<synchronous>, transform_indices = @transform_5, window_bounds = array<i64: 1, 32>}, {transform_indices = @transform_6, window_bounds = array<i64: 1>}, {transform_indices = @transform_7, window_bounds = array<i64: 1>}, {transform_indices = @transform_8, window_bounds = array<i64: 1, 256>}]} {
    %c0 = arith.constant 0 : index
    %c0_0 = arith.constant 0 : index
    %0 = vector.load %arg2[%c0, %c0_0] : memref<32x128xf32, #tpu.memory_space<vmem>>, vector<32x128xf32>
    %c0_1 = arith.constant 0 : index
    %c0_2 = arith.constant 0 : index
    %1 = vector.load %arg3[%c0_1, %c0_2] : memref<1x128xf32, #tpu.memory_space<vmem>>, vector<1x128xf32>
    %c0_3 = arith.constant 0 : index
    %c0_4 = arith.constant 0 : index
    %2 = vector.load %arg4[%c0_3, %c0_4] : memref<128x32xf32, #tpu.memory_space<vmem>>, vector<128x32xf32>
    %c0_5 = arith.constant 0 : index
    %c0_6 = arith.constant 0 : index
    %3 = vector.load %arg5[%c0_5, %c0_6] : memref<1x32xf32, #tpu.memory_space<vmem>>, vector<1x32xf32>
    %c0_7 = arith.constant 0 : index
    %c0_8 = arith.constant 0 : index
    %4 = vector.load %arg6[%c0_7, %c0_8] : memref<1x32xf32, #tpu.memory_space<vmem>>, vector<1x32xf32>
    %c0_9 = arith.constant 0 : index
    %5 = memref.load %arg8[%c0_9] : memref<1xf32, #tpu.memory_space<smem>>
    %c0_10 = arith.constant 0 : index
    %6 = memref.load %arg7[%c0_10] : memref<1xf32, #tpu.memory_space<smem>>
    %c0_11 = arith.constant 0 : index
    %c0_12 = arith.constant 0 : index
    %7 = vector.load %arg1[%c0_11, %c0_12] : memref<256x32xf32, #tpu.memory_space<vmem>>, vector<256x32xf32>
    %cst = arith.constant dense<0.000000e+00> : vector<256x128xf32>
    %8 = tpu.matmul %7, %0, %cst {dimension_numbers = #tpu.dot_dimension_numbers<[1], [0], [0], [1], [0, 0, 1, 1], [], []>} : vector<256x32xf32>, vector<32x128xf32>, vector<256x128xf32> -> vector<256x128xf32>
    %9 = vector.broadcast %1 : vector<1x128xf32> to vector<256x128xf32>
    %10 = arith.addf %8, %9 : vector<256x128xf32>
    %cst_13 = arith.constant 0.000000e+00 : f32
    %11 = vector.broadcast %cst_13 : f32 to vector<256x128xf32>
    %12 = arith.cmpf ogt, %10, %11 : vector<256x128xf32>
    %13 = vector.broadcast %5 : f32 to vector<256x128xf32>
    %14 = arith.mulf %10, %13 : vector<256x128xf32>
    %15 = arith.select %12, %10, %14 : vector<256x128xi1>, vector<256x128xf32>
    %cst_14 = arith.constant dense<0.000000e+00> : vector<256x32xf32>
    %16 = tpu.matmul %15, %2, %cst_14 {dimension_numbers = #tpu.dot_dimension_numbers<[1], [0], [0], [1], [0, 0, 1, 1], [], []>} : vector<256x128xf32>, vector<128x32xf32>, vector<256x32xf32> -> vector<256x32xf32>
    %17 = vector.broadcast %3 : vector<1x32xf32> to vector<256x32xf32>
    %18 = arith.addf %16, %17 : vector<256x32xf32>
    %cst_15 = arith.constant 0.000000e+00 : f32
    %19 = vector.broadcast %cst_15 : f32 to vector<256x32xf32>
    %20 = arith.maximumf %18, %19 : vector<256x32xf32>
    %cst_16 = arith.constant dense<0.000000e+00> : vector<1x256xf32>
    %21 = tpu.matmul %4, %20, %cst_16 {dimension_numbers = #tpu.dot_dimension_numbers<[1], [1], [0], [0], [0, 0, 1, 0], [], []>} : vector<1x32xf32>, vector<256x32xf32>, vector<1x256xf32> -> vector<1x256xf32>
    %22 = vector.broadcast %6 : f32 to vector<1x256xf32>
    %23 = arith.addf %21, %22 : vector<1x256xf32>
    %cst_17 = arith.constant 0.000000e+00 : f32
    %24 = vector.broadcast %cst_17 : f32 to vector<1x256xf32>
    %25 = arith.maximumf %23, %24 : vector<1x256xf32>
    %c0_18 = arith.constant 0 : index
    %c0_19 = arith.constant 0 : index
    %26 = vector.load %arg9[%c0_18, %c0_19] : memref<1x256xf32, #tpu.memory_space<vmem>>, vector<1x256xf32>
    tpu.vector_store %arg9[%c0_18, %c0_19], %25 {strides = array<i32>} : memref<1x256xf32, #tpu.memory_space<vmem>>, vector<1x256xf32>,
    return
  }
  func.func @transform_0(%arg0: i32) -> (i32, i32) {
    %c0_i32 = arith.constant 0 : i32
    %c0_i32_0 = arith.constant 0 : i32
    return %arg0, %c0_i32 : i32, i32
  }
  func.func @transform_1(%arg0: i32) -> (i32, i32) {
    %c0_i32 = arith.constant 0 : i32
    %c0_i32_0 = arith.constant 0 : i32
    %c0_i32_1 = arith.constant 0 : i32
    return %c0_i32, %c0_i32_0 : i32, i32
  }
  func.func @transform_2(%arg0: i32) -> (i32, i32) {
    %c0_i32 = arith.constant 0 : i32
    %c0_i32_0 = arith.constant 0 : i32
    %c0_i32_1 = arith.constant 0 : i32
    return %c0_i32, %c0_i32_0 : i32, i32
  }
  func.func @transform_3(%arg0: i32) -> (i32, i32) {
    %c0_i32 = arith.constant 0 : i32
    %c0_i32_0 = arith.constant 0 : i32
    %c0_i32_1 = arith.constant 0 : i32
    return %c0_i32, %c0_i32_0 : i32, i32
  }
  func.func @transform_4(%arg0: i32) -> (i32, i32) {
    %c0_i32 = arith.constant 0 : i32
    %c0_i32_0 = arith.constant 0 : i32
    %c0_i32_1 = arith.constant 0 : i32
    return %c0_i32, %c0_i32_0 : i32, i32
  }
  func.func @transform_5(%arg0: i32) -> (i32, i32) {
    %c0_i32 = arith.constant 0 : i32
    %c0_i32_0 = arith.constant 0 : i32
    %c0_i32_1 = arith.constant 0 : i32
    return %c0_i32, %c0_i32_0 : i32, i32
  }
  func.func @transform_6(%arg0: i32) -> i32 {
    %c0_i32 = arith.constant 0 : i32
    %c0_i32_0 = arith.constant 0 : i32
    return %c0_i32 : i32
  }
  func.func @transform_7(%arg0: i32) -> i32 {
    %c0_i32 = arith.constant 0 : i32
    %c0_i32_0 = arith.constant 0 : i32
    return %c0_i32 : i32
  }
  func.func @transform_8(%arg0: i32) -> (i32, i32) {
    %c0_i32 = arith.constant 0 : i32
    %c0_i32_0 = arith.constant 0 : i32
    return %c0_i32, %arg0 : i32, i32
  }
}

</mosaic_0001>

<llo_original>
// kernel: tpu_custom_call.1
$region0: #{tpu_custom_call.1}
  #allocation0 [shape = 'u32[]', space=smem, size = 0x4, offset = 0x4, fixed_abs, tag = 'smem constant byte address 0x4 - core index']
  #allocation1 [shape = 'u32[144,128]{1,0:T(1,128)}', space=vmem, size = 0x12000, scoped, tag = 'internal scratch']
  #allocation2 [shape = 'f32[1]{0:T(128)S(6)}', space=smem, size = 0x200, scoped, tag = 'scoped memory for tpu_custom_call.1']
  #allocation3 [shape = 'f32[1]{0:T(128)S(6)}', space=smem, size = 0x200, scoped, tag = 'scoped memory for tpu_custom_call.1']
  %s0 = inlined_call_operand.vmem [shape: f32[300,32], index: 0, kind: input, shape index: {}]
  %s1 = inlined_call_operand.vmem [shape: f32[32,128], index: 1, kind: input, shape index: {}]
  %s2 = inlined_call_operand.vmem [shape: f32[1,128], index: 2, kind: input, shape index: {}]
  %s3 = inlined_call_operand.vmem [shape: f32[128,32], index: 3, kind: input, shape index: {}]
  %s4 = inlined_call_operand.vmem [shape: f32[1,32], index: 4, kind: input, shape index: {}]
  %s5 = inlined_call_operand.vmem [shape: f32[1,32], index: 5, kind: input, shape index: {}]
  %s6 = inlined_call_operand.<no memory space> [shape: f32[1], index: 6, kind: input, shape index: {}]
  %s7 = inlined_call_operand.<no memory space> [shape: f32[1], index: 7, kind: input, shape index: {}]
  %s8 = inlined_call_operand.hbm [shape: f32[1,512], index: 8, kind: output, shape index: {}]
  %s9 = sld [smem:[#allocation0]]
  $region65: #{tpu_custom_call.1} parent=0
    _
  %s11 = ssub.s32 1, %s9
  %s12 = scalar_select 0, %s11, %s9
  %13 = sst [smem:[#allocation2]] %s6
  %14 = sst [smem:[#allocation3]] %s7
  $region1: #{tpu_custom_call.1} parent=0
    #allocation4 [shape = 'u8[2048]{0}', space=vmem, size = 0x800, scoped, tag = 'output window, operand 0']
    #allocation5 [shape = 's32[2]{0}', space=sflag, size = 0x8, scoped, tag = 'scoped memory for tpu_custom_call.1']
    %15 = vsyncpa [#allocation5], 0
    %s16 = scalar_lea.sflag [#allocation5], 1
    %17 = vsyncpa %s16, 0
    loop: start=0, step=1, limit=4
    $region2: #{tpu_custom_call.1} parent=1 // loop_pre_header
      _
    $region3: #{tpu_custom_call.1} parent=1 // loop_header
      %s19 = sphi 0, %s23
      %p20 = scmp.ge.s32.totalorder %s19, 4
      %s29 = sphi 0, %s31
      %s32 = sphi 0, %s29
      %s33 = sphi 0, %s32
      %s49 = sphi 0, %s33
      %s53 = sphi 0, %s53
      %s55 = sphi 0, %s53
      %s56 = sphi 0, %s55
      %s70 = sphi 0, %s56
      %s74 = sphi 0, %s74
      %s76 = sphi 0, %s74
      %s77 = sphi 0, %s76
      %s91 = sphi 0, %s77
      %s95 = sphi 0, %s95
      %s97 = sphi 0, %s95
      %s98 = sphi 0, %s97
      %s112 = sphi 0, %s98
      %s116 = sphi 0, %s116
      %s118 = sphi 0, %s116
      %s119 = sphi 0, %s118
      %s133 = sphi 0, %s119
      %s137 = sphi 0, %s137
      %s139 = sphi 0, %s137
      %s140 = sphi 0, %s139
      %s154 = sphi 0, %s140
      %s158 = sphi 0, %s158
      %s160 = sphi 0, %s158
      %s161 = sphi 0, %s160
      %s175 = sphi 0, %s161
      %s179 = sphi 0, %s179
      %s181 = sphi 0, %s179
      %s182 = sphi 0, %s181
      %s196 = sphi 0, %s182
      %s202 = sphi 0, %s204
      %s205 = sphi 0, %s202
      %s206 = sphi 0, %s205
      %s222 = sphi 0, %s206
    $region4: #{tpu_custom_call.1} parent=1 // loop_header_branch
      %22 = sbr.rel (%p20) target = $region8
    $region5: #{tpu_custom_call.1} parent=1 // loop_body
      %s24 = ssub.s32 %s19, 1
      %s25 = ssub.s32 %s19, 2
      %s26 = sadd.s32 %s19, 1
      %s27 = ssub.s32 %s19, %s26
      %p28 = scmp.eq.s32.totalorder %s27, 0
      %s30 = sadd.s32 %s29, 1
      %s31 = scalar_select %p28, %s29, %s30
      %p34 = pneg %p28
      %p35 = scmp.eq.s32.totalorder %s19, 1
      %p36 = por %p34, %p35
      %p37 = scmp.ne.s32.totalorder %s29, %s32
      %p38 = scmp.eq.s32.totalorder %s19, 0
      %p39 = por %p37, %p38
      %p40 = scmp.ne.s32.totalorder %s29, %s32
      %p41 = scmp.eq.s32.totalorder %s24, 1
      %p42 = por %p40, %p41
      %p43 = scmp.ne.s32.totalorder %s32, %s33
      %p44 = scmp.eq.s32.totalorder %s24, 0
      %p45 = por %p43, %p44
      %p46 = scmp.ne.s32.totalorder %s32, %s33
      %p47 = scmp.eq.s32.totalorder %s25, 1
      %p48 = por %p46, %p47
      %p50 = scmp.ne.s32.totalorder %s33, %s49
      %p51 = scmp.eq.s32.totalorder %s25, 0
      %p52 = por %p50, %p51
      %s54 = sadd.s32 %s53, 1
      %p57 = scmp.eq.s32.totalorder %s19, 1
      %p58 = scmp.ne.s32.totalorder %s53, %s55
      %p59 = scmp.eq.s32.totalorder %s19, 0
      %p60 = por %p58, %p59
      %p61 = scmp.ne.s32.totalorder %s53, %s55
      %p62 = scmp.eq.s32.totalorder %s24, 1
      %p63 = por %p61, %p62
      %p64 = scmp.ne.s32.totalorder %s55, %s56
      %p65 = scmp.eq.s32.totalorder %s24, 0
      %p66 = por %p64, %p65
      %p67 = scmp.ne.s32.totalorder %s55, %s56
      %p68 = scmp.eq.s32.totalorder %s25, 1
      %p69 = por %p67, %p68
      %p71 = scmp.ne.s32.totalorder %s56, %s70
      %p72 = scmp.eq.s32.totalorder %s25, 0
      %p73 = por %p71, %p72
      %s75 = sadd.s32 %s74, 1
      %p78 = scmp.eq.s32.totalorder %s19, 1
      %p79 = scmp.ne.s32.totalorder %s74, %s76
      %p80 = scmp.eq.s32.totalorder %s19, 0
      %p81 = por %p79, %p80
      %p82 = scmp.ne.s32.totalorder %s74, %s76
      %p83 = scmp.eq.s32.totalorder %s24, 1
      %p84 = por %p82, %p83
      %p85 = scmp.ne.s32.totalorder %s76, %s77
      %p86 = scmp.eq.s32.totalorder %s24, 0
      %p87 = por %p85, %p86
      %p88 = scmp.ne.s32.totalorder %s76, %s77
      %p89 = scmp.eq.s32.totalorder %s25, 1
      %p90 = por %p88, %p89
      %p92 = scmp.ne.s32.totalorder %s77, %s91
      %p93 = scmp.eq.s32.totalorder %s25, 0
      %p94 = por %p92, %p93
      %s96 = sadd.s32 %s95, 1
      %p99 = scmp.eq.s32.totalorder %s19, 1
      %p100 = scmp.ne.s32.totalorder %s95, %s97
      %p101 = scmp.eq.s32.totalorder %s19, 0
      %p102 = por %p100, %p101
      %p103 = scmp.ne.s32.totalorder %s95, %s97
      %p104 = scmp.eq.s32.totalorder %s24, 1
      %p105 = por %p103, %p104
      %p106 = scmp.ne.s32.totalorder %s97, %s98
      %p107 = scmp.eq.s32.totalorder %s24, 0
      %p108 = por %p106, %p107
      %p109 = scmp.ne.s32.totalorder %s97, %s98
      %p110 = scmp.eq.s32.totalorder %s25, 1
      %p111 = por %p109, %p110
      %p113 = scmp.ne.s32.totalorder %s98, %s112
      %p114 = scmp.eq.s32.totalorder %s25, 0
      %p115 = por %p113, %p114
      %s117 = sadd.s32 %s116, 1
      %p120 = scmp.eq.s32.totalorder %s19, 1
      %p121 = scmp.ne.s32.totalorder %s116, %s118
      %p122 = scmp.eq.s32.totalorder %s19, 0
      %p123 = por %p121, %p122
      %p124 = scmp.ne.s32.totalorder %s116, %s118
      %p125 = scmp.eq.s32.totalorder %s24, 1
      %p126 = por %p124, %p125
      %p127 = scmp.ne.s32.totalorder %s118, %s119
      %p128 = scmp.eq.s32.totalorder %s24, 0
      %p129 = por %p127, %p128
      %p130 = scmp.ne.s32.totalorder %s118, %s119
      %p131 = scmp.eq.s32.totalorder %s25, 1
      %p132 = por %p130, %p131
      %p134 = scmp.ne.s32.totalorder %s119, %s133
      %p135 = scmp.eq.s32.totalorder %s25, 0
      %p136 = por %p134, %p135
      %s138 = sadd.s32 %s137, 1
      %p141 = scmp.eq.s32.totalorder %s19, 1
      %p142 = scmp.ne.s32.totalorder %s137, %s139
      %p143 = scmp.eq.s32.totalorder %s19, 0
      %p144 = por %p142, %p143
      %p145 = scmp.ne.s32.totalorder %s137, %s139
      %p146 = scmp.eq.s32.totalorder %s24, 1
      %p147 = por %p145, %p146
      %p148 = scmp.ne.s32.totalorder %s139, %s140
      %p149 = scmp.eq.s32.totalorder %s24, 0
      %p150 = por %p148, %p149
      %p151 = scmp.ne.s32.totalorder %s139, %s140
      %p152 = scmp.eq.s32.totalorder %s25, 1
      %p153 = por %p151, %p152
      %p155 = scmp.ne.s32.totalorder %s140, %s154
      %p156 = scmp.eq.s32.totalorder %s25, 0
      %p157 = por %p155, %p156
      %s159 = sadd.s32 %s158, 1
      %p162 = scmp.eq.s32.totalorder %s19, 1
      %p163 = scmp.ne.s32.totalorder %s158, %s160
      %p164 = scmp.eq.s32.totalorder %s19, 0
      %p165 = por %p163, %p164
      %p166 = scmp.ne.s32.totalorder %s158, %s160
      %p167 = scmp.eq.s32.totalorder %s24, 1
      %p168 = por %p166, %p167
      %p169 = scmp.ne.s32.totalorder %s160, %s161
      %p170 = scmp.eq.s32.totalorder %s24, 0
      %p171 = por %p169, %p170
      %p172 = scmp.ne.s32.totalorder %s160, %s161
      %p173 = scmp.eq.s32.totalorder %s25, 1
      %p174 = por %p172, %p173
      %p176 = scmp.ne.s32.totalorder %s161, %s175
      %p177 = scmp.eq.s32.totalorder %s25, 0
      %p178 = por %p176, %p177
      %s180 = sadd.s32 %s179, 1
      %p183 = scmp.eq.s32.totalorder %s19, 1
      %p184 = scmp.ne.s32.totalorder %s179, %s181
      %p185 = scmp.eq.s32.totalorder %s19, 0
      %p186 = por %p184, %p185
      %p187 = scmp.ne.s32.totalorder %s179, %s181
      %p188 = scmp.eq.s32.totalorder %s24, 1
      %p189 = por %p187, %p188
      %p190 = scmp.ne.s32.totalorder %s181, %s182
      %p191 = scmp.eq.s32.totalorder %s24, 0
      %p192 = por %p190, %p191
      %p193 = scmp.ne.s32.totalorder %s181, %s182
      %p194 = scmp.eq.s32.totalorder %s25, 1
      %p195 = por %p193, %p194
      %p197 = scmp.ne.s32.totalorder %s182, %s196
      %p198 = scmp.eq.s32.totalorder %s25, 0
      %p199 = por %p197, %p198
      %s200 = ssub.s32 %s19, %s26
      %p201 = scmp.eq.s32.totalorder %s200, 0
      %s203 = sadd.s32 %s202, 1
      %s204 = scalar_select %p201, %s202, %s203
      %p207 = pneg %p201
      %p208 = scmp.eq.s32.totalorder %s19, 1
      %p209 = por %p207, %p208
      %p210 = scmp.ne.s32.totalorder %s202, %s205
      %p211 = scmp.eq.s32.totalorder %s19, 0
      %p212 = por %p210, %p211
      %p213 = scmp.ne.s32.totalorder %s202, %s205
      %p214 = scmp.eq.s32.totalorder %s24, 1
      %p215 = por %p213, %p214
      %p216 = scmp.ne.s32.totalorder %s205, %s206
      %p217 = scmp.eq.s32.totalorder %s24, 0
      %p218 = por %p216, %p217
      %p219 = scmp.ne.s32.totalorder %s205, %s206
      %p220 = scmp.eq.s32.totalorder %s25, 1
      %p221 = por %p219, %p220
      %p223 = scmp.ne.s32.totalorder %s206, %s222
      %p224 = scmp.eq.s32.totalorder %s25, 0
      %p225 = por %p223, %p224
      %p226 = scmp.le.s32.totalorder 1, %s19
      %p227 = scmp.lt.s32.totalorder %s19, 3
      %p228 = pnand %p226, %p227
      %p229 = pneg %p228
      // Predicated region
      $region9: #{tpu_custom_call.1} parent=5 // pred_check
        _
      $region10: #{tpu_custom_call.1} parent=5 // pred_check_branch
        %231 = sbr.rel (%p228) target = $region12
      $region11: #{tpu_custom_call.1} parent=5 // pred_region
        %s232 = ssub.s32 %s19, 1
        // Predicated region
        $region13: #{tpu_custom_call.1} parent=11 // pred_check
          %p233 = pneg %p66
        $region14: #{tpu_custom_call.1} parent=11 // pred_check_branch
          %235 = sbr.rel (%p233) target = $region16
        $region15: #{tpu_custom_call.1} parent=11 // pred_region
          _
        $region16: #{tpu_custom_call.1} parent=11 // pred_fallthru
          _
        // Predicated region
        $region17: #{tpu_custom_call.1} parent=11 // pred_check
          %p236 = pneg %p87
        $region18: #{tpu_custom_call.1} parent=11 // pred_check_branch
          %238 = sbr.rel (%p236) target = $region20
        $region19: #{tpu_custom_call.1} parent=11 // pred_region
          _
        $region20: #{tpu_custom_call.1} parent=11 // pred_fallthru
          _
        // Predicated region
        $region21: #{tpu_custom_call.1} parent=11 // pred_check
          %p239 = pneg %p108
        $region22: #{tpu_custom_call.1} parent=11 // pred_check_branch
          %241 = sbr.rel (%p239) target = $region24
        $region23: #{tpu_custom_call.1} parent=11 // pred_region
          _
        $region24: #{tpu_custom_call.1} parent=11 // pred_fallthru
          _
        // Predicated region
        $region25: #{tpu_custom_call.1} parent=11 // pred_check
          %p242 = pneg %p129
        $region26: #{tpu_custom_call.1} parent=11 // pred_check_branch
          %244 = sbr.rel (%p242) target = $region28
        $region27: #{tpu_custom_call.1} parent=11 // pred_region
          _
        $region28: #{tpu_custom_call.1} parent=11 // pred_fallthru
          _
        // Predicated region
        $region29: #{tpu_custom_call.1} parent=11 // pred_check
          %p245 = pneg %p150
        $region30: #{tpu_custom_call.1} parent=11 // pred_check_branch
          %247 = sbr.rel (%p245) target = $region32
        $region31: #{tpu_custom_call.1} parent=11 // pred_region
          _
        $region32: #{tpu_custom_call.1} parent=11 // pred_fallthru
          _
        // Predicated region
        $region33: #{tpu_custom_call.1} parent=11 // pred_check
          %p248 = pneg %p171
        $region34: #{tpu_custom_call.1} parent=11 // pred_check_branch
          %250 = sbr.rel (%p248) target = $region36
        $region35: #{tpu_custom_call.1} parent=11 // pred_region
          _
        $region36: #{tpu_custom_call.1} parent=11 // pred_fallthru
          _
        // Predicated region
        $region37: #{tpu_custom_call.1} parent=11 // pred_check
          %p251 = pneg %p192
        $region38: #{tpu_custom_call.1} parent=11 // pred_check_branch
          %253 = sbr.rel (%p251) target = $region40
        $region39: #{tpu_custom_call.1} parent=11 // pred_region
          _
        $region40: #{tpu_custom_call.1} parent=11 // pred_fallthru
          _
      $region12: #{tpu_custom_call.1} parent=5 // pred_fallthru
        _
      %p254 = scmp.lt.s32.totalorder %s19, 2
      // Predicated region
      $region41: #{tpu_custom_call.1} parent=5 // pred_check
        %p255 = pneg %p254
      $region42: #{tpu_custom_call.1} parent=5 // pred_check_branch
        %257 = sbr.rel (%p255) target = $region44
      $region43: #{tpu_custom_call.1} parent=5 // pred_region
        // Predicated region
        $region45: #{tpu_custom_call.1} parent=43 // pred_check
          %p258 = pneg %p39
        $region46: #{tpu_custom_call.1} parent=43 // pred_check_branch
          %260 = sbr.rel (%p258) target = $region48
        $region47: #{tpu_custom_call.1} parent=43 // pred_region
          %s261 = smul.u32 32, %s19
          %s262 = ssub.s32 38, %s261
          %p263 = scmp.lt.s32.totalorder %s262, 32
          %s264 = scalar_select %p263, %s262, 32
          %s265 = smul.u32 128, %s264
          %p266 = scmp.lt.s32.totalorder %s261, 37
          %s267 = scalar_select %p266, %s261, 37
          %s268 = smul.addr %s267, 8
          %s269 = scalar_lea.vmem %s0, %s268
          %s270 = smul.u32 32, %s19
          %s271 = ssub.s32 38, %s270
          %p272 = scmp.lt.s32.totalorder %s271, 32
          %s273 = scalar_select %p272, %s271, 32
          %s274 = smul.u32 128, %s273
        $region48: #{tpu_custom_call.1} parent=43 // pred_fallthru
          _
      $region44: #{tpu_custom_call.1} parent=5 // pred_fallthru
        _
      %p275 = scmp.le.s32.totalorder 1, %s19
      %p276 = scmp.lt.s32.totalorder %s19, 3
      %p277 = pnand %p275, %p276
      %p278 = pneg %p277
      // Predicated region
      $region49: #{tpu_custom_call.1} parent=5 // pred_check
        _
      $region50: #{tpu_custom_call.1} parent=5 // pred_check_branch
        %280 = sbr.rel (%p277) target = $region52
      $region51: #{tpu_custom_call.1} parent=5 // pred_region
        %s281 = ssub.s32 %s19, 1
        %s282 = smul.u32 32, %s24
        %s283 = ssub.s32 38, %s282
        %p284 = scmp.lt.s32.totalorder %s283, 32
        %s285 = scalar_select %p284, %s283, 32
        %s286 = smul.u32 128, %s285
        %p287 = scmp.lt.s32.totalorder %s282, 37
        %s288 = scalar_select %p287, %s282, 37
        %s289 = smul.addr %s288, 8
        %s290 = scalar_lea.vmem %s0, %s289
        %p291 = pneg %p45
        %p292 = pneg %p42
        %p293 = pneg %p66
        %p294 = pneg %p63
        %p295 = pneg %p87
        %p296 = pneg %p84
        %p297 = pneg %p108
        %p298 = pneg %p105
        %p299 = pneg %p129
        %p300 = pneg %p126
        %p301 = pneg %p150
        %p302 = pneg %p147
        %p303 = pneg %p171
        %p304 = pneg %p168
        %p305 = pneg %p192
        %p306 = pneg %p189
        %p307 = pneg %p218
        %p308 = pneg %p215
        %s309 = sand.u32 %s205, 1
        %s310 = scalar_lea.sflag [#allocation5], %s309
        %s311 = sand.u32 %s205, 1
        %s312 = smul.addr %s311, 2
        %s313 = scalar_lea.vmem [#allocation4], %s312
        %s314 = smul.u32 32, %s24
        %s315 = ssub.s32 38, %s314
        %p316 = scmp.lt.s32.totalorder %s315, 32
        %s317 = scalar_select %p316, %s315, 32
        %s318 = smul.u32 128, %s317
        %p319 = scmp.lt.s32.totalorder %s314, 37
        %s320 = scalar_select %p319, %s314, 37
        %s321 = smul.addr %s320, 8
        %s322 = scalar_lea.vmem %s0, %s321
        %s323 = smul.u32 32, %s24
        %s324 = ssub.s32 38, %s323
        %p325 = scmp.lt.s32.totalorder %s324, 32
        %s326 = scalar_select %p325, %s324, 32
        %s327 = smul.u32 128, %s326
        %s328 = smul.u32 2, %s24
        %v329 = vld [vmem:[%s1] sm:$0xff]
        %v330 = vld [vmem:[%s1 + $0x8] sm:$0xff]
        %v331 = vld [vmem:[%s1 + $0x10] sm:$0xff]
        %v332 = vld [vmem:[%s1 + $0x18] sm:$0xff]
        %v333 = vld [vmem:[%s2] sm:$0x1]
        %v334 = vld [vmem:[%s3] sm:$0xff]
        %v335 = vld [vmem:[%s3 + $0x8] sm:$0xff]
        %v336 = vld [vmem:[%s3 + $0x10] sm:$0xff]
        %v337 = vld [vmem:[%s3 + $0x18] sm:$0xff]
        %v338 = vld [vmem:[%s3 + $0x20] sm:$0xff]
        %v339 = vld [vmem:[%s3 + $0x28] sm:$0xff]
        %v340 = vld [vmem:[%s3 + $0x30] sm:$0xff]
        %v341 = vld [vmem:[%s3 + $0x38] sm:$0xff]
        %v342 = vld [vmem:[%s3 + $0x40] sm:$0xff]
        %v343 = vld [vmem:[%s3 + $0x48] sm:$0xff]
        %v344 = vld [vmem:[%s3 + $0x50] sm:$0xff]
        %v345 = vld [vmem:[%s3 + $0x58] sm:$0xff]
        %v346 = vld [vmem:[%s3 + $0x60] sm:$0xff]
        %v347 = vld [vmem:[%s3 + $0x68] sm:$0xff]
        %v348 = vld [vmem:[%s3 + $0x70] sm:$0xff]
        %v349 = vld [vmem:[%s3 + $0x78] sm:$0xff]
        %v350 = vld [vmem:[%s4] sm:$0x1]
        %v351 = vld [vmem:[%s5] sm:$0x1]
        %s352 = sld [smem:[#allocation3]]
        %s353 = sld [smem:[#allocation2]]
        %v354 = vld [vmem:[%s322] sm:$0xff]
        %v355 = vld [vmem:[%s322 + $0x8] sm:$0xff]
        %v356 = vld [vmem:[%s322 + $0x10] sm:$0xff]
        %v357 = vld [vmem:[%s322 + $0x18] sm:$0xff]
        %v358 = vld [vmem:[%s322 + $0x20] sm:$0xff]
        %v359 = vld [vmem:[%s322 + $0x28] sm:$0xff]
        %v360 = vld [vmem:[%s322 + $0x30] sm:$0xff]
        %v361 = vld [vmem:[%s322 + $0x38] sm:$0xff]
        %v362 = vld [vmem:[%s322 + $0x40] sm:$0xff]
        %v363 = vld [vmem:[%s322 + $0x48] sm:$0xff]
        %v364 = vld [vmem:[%s322 + $0x50] sm:$0xff]
        %v365 = vld [vmem:[%s322 + $0x58] sm:$0xff]
        %v366 = vld [vmem:[%s322 + $0x60] sm:$0xff]
        %v367 = vld [vmem:[%s322 + $0x68] sm:$0xff]
        %v368 = vld [vmem:[%s322 + $0x70] sm:$0xff]
        %v369 = vld [vmem:[%s322 + $0x78] sm:$0xff]
        %v370 = vld [vmem:[%s322 + $0x80] sm:$0xff]
        %v371 = vld [vmem:[%s322 + $0x88] sm:$0xff]
        %v372 = vld [vmem:[%s322 + $0x90] sm:$0xff]
        %v373 = vld [vmem:[%s322 + $0x98] sm:$0xff]
        %v374 = vld [vmem:[%s322 + $0xa0] sm:$0xff]
        %v375 = vld [vmem:[%s322 + $0xa8] sm:$0xff]
        %v376 = vld [vmem:[%s322 + $0xb0] sm:$0xff]
        %v377 = vld [vmem:[%s322 + $0xb8] sm:$0xff]
        %v378 = vld [vmem:[%s322 + $0xc0] sm:$0xff]
        %v379 = vld [vmem:[%s322 + $0xc8] sm:$0xff]
        %v380 = vld [vmem:[%s322 + $0xd0] sm:$0xff]
        %v381 = vld [vmem:[%s322 + $0xd8] sm:$0xff]
        %v382 = vld [vmem:[%s322 + $0xe0] sm:$0xff]
        %v383 = vld [vmem:[%s322 + $0xe8] sm:$0xff]
        %v384 = vld [vmem:[%s322 + $0xf0] sm:$0xff]
        %v385 = vld [vmem:[%s322 + $0xf8] sm:$0xff]
        %v387 = vlaneseq
        %v388 = vshrl.u32 %v387, 7
        %v389 = vsub.s32 0, %v388
        %v390 = vrot.slane %v333, %v389
        %vm392 = vcmask 261120
        %v394 = vsel %vm392, %v354, 0
        %v397 = vsel %vm392, %v355, 0
        %v400 = vsel %vm392, %v356, 0
        %v403 = vsel %vm392, %v357, 0
        %v406 = vsel %vm392, %v358, 0
        %v409 = vsel %vm392, %v359, 0
        %v412 = vsel %vm392, %v360, 0
        %v415 = vsel %vm392, %v361, 0
        %v418 = vsel %vm392, %v362, 0
        %v421 = vsel %vm392, %v363, 0
        %v424 = vsel %vm392, %v364, 0
        %v427 = vsel %vm392, %v365, 0
        %v430 = vsel %vm392, %v366, 0
        %v433 = vsel %vm392, %v367, 0
        %v436 = vsel %vm392, %v368, 0
        %v439 = vsel %vm392, %v369, 0
        %v442 = vsel %vm392, %v370, 0
        %v445 = vsel %vm392, %v371, 0
        %v448 = vsel %vm392, %v372, 0
        %v451 = vsel %vm392, %v373, 0
        %v454 = vsel %vm392, %v374, 0
        %v457 = vsel %vm392, %v375, 0
        %v460 = vsel %vm392, %v376, 0
        %v463 = vsel %vm392, %v377, 0
        %v466 = vsel %vm392, %v378, 0
        %v469 = vsel %vm392, %v379, 0
        %v472 = vsel %vm392, %v380, 0
        %v475 = vsel %vm392, %v381, 0
        %v478 = vsel %vm392, %v382, 0
        %v481 = vsel %vm392, %v383, 0
        %v484 = vsel %vm392, %v384, 0
        %v487 = vsel %vm392, %v385, 0
        %489 = vmatprep.subr.mxu0 0.0
        %490 = vmatpush1.msra.mxu0 0.0
        %491 = vmatprep.subr.mxu0 0.0
        %492 = vmatpush1.msra.mxu0 0.0
        %493 = vmatprep.subr.mxu0 0.0
        %494 = vmatpush1.msra.mxu0 0.0
        %495 = vmatprep.subr.mxu0 0.0
        %496 = vmatpush1.msra.mxu0 0.0
        %497 = vmatprep.subr.mxu0 0.0
        %498 = vmatpush1.msra.mxu0 0.0
        %499 = vmatprep.subr.mxu0 0.0
        %500 = vmatpush1.msra.mxu0 0.0
        %501 = vmatprep.subr.mxu0 0.0
        %502 = vmatpush1.msra.mxu0 0.0
        %503 = vmatprep.subr.mxu0 0.0
        %504 = vmatpush1.msra.mxu0 0.0
        %505 = vmatprep.subr.mxu0 0.0
        %506 = vmatpush1.msra.mxu0 0.0
        %507 = vmatprep.subr.mxu0 0.0
        %508 = vmatpush1.msra.mxu0 0.0
        %509 = vmatprep.subr.mxu0 0.0
        %510 = vmatpush1.msra.mxu0 0.0
        %511 = vmatprep.subr.mxu0 0.0
        %512 = vmatpush1.msra.mxu0 0.0
        %513 = vmatprep.subr.mxu0 0.0
        %514 = vmatpush1.msra.mxu0 %v332
        %515 = vmatprep.subr.mxu0 0.0
        %516 = vmatpush1.msra.mxu0 %v331
        %517 = vmatprep.subr.mxu0 0.0
        %518 = vmatpush1.msra.mxu0 %v330
        %519 = vmatprep.subr.mxu0 0.0
        %520 = vmatpush1.msra.mxu0 %v329
        %521 = vmatprep.subr.mxu0 0.0
        %522 = vmatpush2.msra.mxu0 0.0
        %523 = vmatprep.subr.mxu0 0.0
        %524 = vmatpush2.msra.mxu0 0.0
        %525 = vmatprep.subr.mxu0 0.0
        %526 = vmatpush2.msra.mxu0 0.0
        %527 = vmatprep.subr.mxu0 0.0
        %528 = vmatpush2.msra.mxu0 0.0
        %529 = vmatprep.subr.mxu0 0.0
        %530 = vmatpush2.msra.mxu0 0.0
        %531 = vmatprep.subr.mxu0 0.0
        %532 = vmatpush2.msra.mxu0 0.0
        %533 = vmatprep.subr.mxu0 0.0
        %534 = vmatpush2.msra.mxu0 0.0
        %535 = vmatprep.subr.mxu0 0.0
        %536 = vmatpush2.msra.mxu0 0.0
        %537 = vmatprep.subr.mxu0 0.0
        %538 = vmatpush2.msra.mxu0 0.0
        %539 = vmatprep.subr.mxu0 0.0
        %540 = vmatpush2.msra.mxu0 0.0
        %541 = vmatprep.subr.mxu0 0.0
        %542 = vmatpush2.msra.mxu0 0.0
        %543 = vmatprep.subr.mxu0 0.0
        %544 = vmatpush2.msra.mxu0 0.0
        %545 = vmatprep.subr.mxu0 0.0
        %546 = vmatpush2.msra.mxu0 0.0
        %547 = vmatprep.subr.mxu0 0.0
        %548 = vmatpush2.msra.mxu0 0.0
        %549 = vmatprep.subr.mxu0 0.0
        %550 = vmatpush2.msra.mxu0 0.0
        %551 = vmatprep.subr.mxu0 0.0
        %552 = vmatpush2.msra.mxu0 0.0
        %553 = vmatprep.mubr.f32.mxu0 0.0
        %554 = vmatmul.mubr.f32.gmra.mxu0 %v394
        %v555 = vpop.f32.mrf.mxu0
        %v556 = vadd.f32 %v390, %v555
        %v557 = vpop.f32.mrf.mxu0
        %558 = vmatprep.mubr.f32.mxu0 0.0
        %559 = vmatmul.mubr.f32.gmra.mxu0 %v397
        %v560 = vpop.f32.mrf.mxu0
        %v561 = vadd.f32 %v390, %v560
        %v562 = vpop.f32.mrf.mxu0
        %563 = vmatprep.mubr.f32.mxu0 0.0
        %564 = vmatmul.mubr.f32.gmra.mxu0 %v400
        %v565 = vpop.f32.mrf.mxu0
        %v566 = vadd.f32 %v390, %v565
        %v567 = vpop.f32.mrf.mxu0
        %568 = vmatprep.mubr.f32.mxu0 0.0
        %569 = vmatmul.mubr.f32.gmra.mxu0 %v403
        %v570 = vpop.f32.mrf.mxu0
        %v571 = vadd.f32 %v390, %v570
        %v572 = vpop.f32.mrf.mxu0
        %573 = vmatprep.mubr.f32.mxu0 0.0
        %574 = vmatmul.mubr.f32.gmra.mxu0 %v406
        %v575 = vpop.f32.mrf.mxu0
        %v576 = vadd.f32 %v390, %v575
        %v577 = vpop.f32.mrf.mxu0
        %578 = vmatprep.mubr.f32.mxu0 0.0
        %579 = vmatmul.mubr.f32.gmra.mxu0 %v409
        %v580 = vpop.f32.mrf.mxu0
        %v581 = vadd.f32 %v390, %v580
        %v582 = vpop.f32.mrf.mxu0
        %583 = vmatprep.mubr.f32.mxu0 0.0
        %584 = vmatmul.mubr.f32.gmra.mxu0 %v412
        %v585 = vpop.f32.mrf.mxu0
        %v586 = vadd.f32 %v390, %v585
        %v587 = vpop.f32.mrf.mxu0
        %588 = vmatprep.mubr.f32.mxu0 0.0
        %589 = vmatmul.mubr.f32.gmra.mxu0 %v415
        %v590 = vpop.f32.mrf.mxu0
        %v591 = vadd.f32 %v390, %v590
        %v592 = vpop.f32.mrf.mxu0
        %593 = vmatprep.mubr.f32.mxu0 0.0
        %594 = vmatmul.mubr.f32.gmra.mxu0 %v418
        %v595 = vpop.f32.mrf.mxu0
        %v596 = vadd.f32 %v390, %v595
        %v597 = vpop.f32.mrf.mxu0
        %598 = vmatprep.mubr.f32.mxu0 0.0
        %599 = vmatmul.mubr.f32.gmra.mxu0 %v421
        %v600 = vpop.f32.mrf.mxu0
        %v601 = vadd.f32 %v390, %v600
        %v602 = vpop.f32.mrf.mxu0
        %603 = vmatprep.mubr.f32.mxu0 0.0
        %604 = vmatmul.mubr.f32.gmra.mxu0 %v424
        %v605 = vpop.f32.mrf.mxu0
        %v606 = vadd.f32 %v390, %v605
        %v607 = vpop.f32.mrf.mxu0
        %608 = vmatprep.mubr.f32.mxu0 0.0
        %609 = vmatmul.mubr.f32.gmra.mxu0 %v427
        %v610 = vpop.f32.mrf.mxu0
        %v611 = vadd.f32 %v390, %v610
        %v612 = vpop.f32.mrf.mxu0
        %613 = vmatprep.mubr.f32.mxu0 0.0
        %614 = vmatmul.mubr.f32.gmra.mxu0 %v430
        %v615 = vpop.f32.mrf.mxu0
        %v616 = vadd.f32 %v390, %v615
        %v617 = vpop.f32.mrf.mxu0
        %618 = vmatprep.mubr.f32.mxu0 0.0
        %619 = vmatmul.mubr.f32.gmra.mxu0 %v433
        %v620 = vpop.f32.mrf.mxu0
        %v621 = vadd.f32 %v390, %v620
        %v622 = vpop.f32.mrf.mxu0
        %623 = vmatprep.mubr.f32.mxu0 0.0
        %624 = vmatmul.mubr.f32.gmra.mxu0 %v436
        %v625 = vpop.f32.mrf.mxu0
        %v626 = vadd.f32 %v390, %v625
        %v627 = vpop.f32.mrf.mxu0
        %628 = vmatprep.mubr.f32.mxu0 0.0
        %629 = vmatmul.mubr.f32.gmra.mxu0 %v439
        %v630 = vpop.f32.mrf.mxu0
        %v631 = vadd.f32 %v390, %v630
        %v632 = vpop.f32.mrf.mxu0
        %633 = vmatprep.mubr.f32.mxu0 0.0
        %634 = vmatmul.mubr.f32.gmra.mxu0 %v442
        %v635 = vpop.f32.mrf.mxu0
        %v636 = vadd.f32 %v390, %v635
        %v637 = vpop.f32.mrf.mxu0
        %638 = vmatprep.mubr.f32.mxu0 0.0
        %639 = vmatmul.mubr.f32.gmra.mxu0 %v445
        %v640 = vpop.f32.mrf.mxu0
        %v641 = vadd.f32 %v390, %v640
        %v642 = vpop.f32.mrf.mxu0
        %643 = vmatprep.mubr.f32.mxu0 0.0
        %644 = vmatmul.mubr.f32.gmra.mxu0 %v448
        %v645 = vpop.f32.mrf.mxu0
        %v646 = vadd.f32 %v390, %v645
        %v647 = vpop.f32.mrf.mxu0
        %648 = vmatprep.mubr.f32.mxu0 0.0
        %649 = vmatmul.mubr.f32.gmra.mxu0 %v451
        %v650 = vpop.f32.mrf.mxu0
        %v651 = vadd.f32 %v390, %v650
        %v652 = vpop.f32.mrf.mxu0
        %653 = vmatprep.mubr.f32.mxu0 0.0
        %654 = vmatmul.mubr.f32.gmra.mxu0 %v454
        %v655 = vpop.f32.mrf.mxu0
        %v656 = vadd.f32 %v390, %v655
        %v657 = vpop.f32.mrf.mxu0
        %658 = vmatprep.mubr.f32.mxu0 0.0
        %659 = vmatmul.mubr.f32.gmra.mxu0 %v457
        %v660 = vpop.f32.mrf.mxu0
        %v661 = vadd.f32 %v390, %v660
        %v662 = vpop.f32.mrf.mxu0
        %663 = vmatprep.mubr.f32.mxu0 0.0
        %664 = vmatmul.mubr.f32.gmra.mxu0 %v460
        %v665 = vpop.f32.mrf.mxu0
        %v666 = vadd.f32 %v390, %v665
        %v667 = vpop.f32.mrf.mxu0
        %668 = vmatprep.mubr.f32.mxu0 0.0
        %669 = vmatmul.mubr.f32.gmra.mxu0 %v463
        %v670 = vpop.f32.mrf.mxu0
        %v671 = vadd.f32 %v390, %v670
        %v672 = vpop.f32.mrf.mxu0
        %673 = vmatprep.mubr.f32.mxu0 0.0
        %674 = vmatmul.mubr.f32.gmra.mxu0 %v466
        %v675 = vpop.f32.mrf.mxu0
        %v676 = vadd.f32 %v390, %v675
        %v677 = vpop.f32.mrf.mxu0
        %678 = vmatprep.mubr.f32.mxu0 0.0
        %679 = vmatmul.mubr.f32.gmra.mxu0 %v469
        %v680 = vpop.f32.mrf.mxu0
        %v681 = vadd.f32 %v390, %v680
        %v682 = vpop.f32.mrf.mxu0
        %683 = vmatprep.mubr.f32.mxu0 0.0
        %684 = vmatmul.mubr.f32.gmra.mxu0 %v472
        %v685 = vpop.f32.mrf.mxu0
        %v686 = vadd.f32 %v390, %v685
        %v687 = vpop.f32.mrf.mxu0
        %688 = vmatprep.mubr.f32.mxu0 0.0
        %689 = vmatmul.mubr.f32.gmra.mxu0 %v475
        %v690 = vpop.f32.mrf.mxu0
        %v691 = vadd.f32 %v390, %v690
        %v692 = vpop.f32.mrf.mxu0
        %693 = vmatprep.mubr.f32.mxu0 0.0
        %694 = vmatmul.mubr.f32.gmra.mxu0 %v478
        %v695 = vpop.f32.mrf.mxu0
        %v696 = vadd.f32 %v390, %v695
        %v697 = vpop.f32.mrf.mxu0
        %698 = vmatprep.mubr.f32.mxu0 0.0
        %699 = vmatmul.mubr.f32.gmra.mxu0 %v481
        %v700 = vpop.f32.mrf.mxu0
        %v701 = vadd.f32 %v390, %v700
        %v702 = vpop.f32.mrf.mxu0
        %703 = vmatprep.mubr.f32.mxu0 0.0
        %704 = vmatmul.mubr.f32.gmra.mxu0 %v484
        %v705 = vpop.f32.mrf.mxu0
        %v706 = vadd.f32 %v390, %v705
        %v707 = vpop.f32.mrf.mxu0
        %708 = vmatprep.mubr.f32.mxu0 0.0
        %709 = vmatmul.mubr.f32.gmra.mxu0 %v487
        %v710 = vpop.f32.mrf.mxu0
        %v711 = vadd.f32 %v390, %v710
        %v712 = vpop.f32.mrf.mxu0
        %713 = vdwg.mxu0
        %vm714 = vcmp.gt.f32.partialorder %v556, 0.0
        %vm715 = vcmp.gt.f32.partialorder %v561, 0.0
        %vm716 = vcmp.gt.f32.partialorder %v566, 0.0
        %vm717 = vcmp.gt.f32.partialorder %v571, 0.0
        %vm718 = vcmp.gt.f32.partialorder %v576, 0.0
        %vm719 = vcmp.gt.f32.partialorder %v581, 0.0
        %vm720 = vcmp.gt.f32.partialorder %v586, 0.0
        %vm721 = vcmp.gt.f32.partialorder %v591, 0.0
        %vm722 = vcmp.gt.f32.partialorder %v596, 0.0
        %vm723 = vcmp.gt.f32.partialorder %v601, 0.0
        %vm724 = vcmp.gt.f32.partialorder %v606, 0.0
        %vm725 = vcmp.gt.f32.partialorder %v611, 0.0
        %vm726 = vcmp.gt.f32.partialorder %v616, 0.0
        %vm727 = vcmp.gt.f32.partialorder %v621, 0.0
        %vm728 = vcmp.gt.f32.partialorder %v626, 0.0
        %vm729 = vcmp.gt.f32.partialorder %v631, 0.0
        %vm730 = vcmp.gt.f32.partialorder %v636, 0.0
        %vm731 = vcmp.gt.f32.partialorder %v641, 0.0
        %vm732 = vcmp.gt.f32.partialorder %v646, 0.0
        %vm733 = vcmp.gt.f32.partialorder %v651, 0.0
        %vm734 = vcmp.gt.f32.partialorder %v656, 0.0
        %vm735 = vcmp.gt.f32.partialorder %v661, 0.0
        %vm736 = vcmp.gt.f32.partialorder %v666, 0.0
        %vm737 = vcmp.gt.f32.partialorder %v671, 0.0
        %vm738 = vcmp.gt.f32.partialorder %v676, 0.0
        %vm739 = vcmp.gt.f32.partialorder %v681, 0.0
        %vm740 = vcmp.gt.f32.partialorder %v686, 0.0
        %vm741 = vcmp.gt.f32.partialorder %v691, 0.0
        %vm742 = vcmp.gt.f32.partialorder %v696, 0.0
        %vm743 = vcmp.gt.f32.partialorder %v701, 0.0
        %vm744 = vcmp.gt.f32.partialorder %v706, 0.0
        %vm745 = vcmp.gt.f32.partialorder %v711, 0.0
        %v746 = vstv %s352
        %v747 = vmul.f32 %v556, %v746
        %v748 = vmul.f32 %v561, %v746
        %v749 = vmul.f32 %v566, %v746
        %v750 = vmul.f32 %v571, %v746
        %v751 = vmul.f32 %v576, %v746
        %v752 = vmul.f32 %v581, %v746
        %v753 = vmul.f32 %v586, %v746
        %v754 = vmul.f32 %v591, %v746
        %v755 = vmul.f32 %v596, %v746
        %v756 = vmul.f32 %v601, %v746
        %v757 = vmul.f32 %v606, %v746
        %v758 = vmul.f32 %v611, %v746
        %v759 = vmul.f32 %v616, %v746
        %v760 = vmul.f32 %v621, %v746
        %v761 = vmul.f32 %v626, %v746
        %v762 = vmul.f32 %v631, %v746
        %v763 = vmul.f32 %v636, %v746
        %v764 = vmul.f32 %v641, %v746
        %v765 = vmul.f32 %v646, %v746
        %v766 = vmul.f32 %v651, %v746
        %v767 = vmul.f32 %v656, %v746
        %v768 = vmul.f32 %v661, %v746
        %v769 = vmul.f32 %v666, %v746
        %v770 = vmul.f32 %v671, %v746
        %v771 = vmul.f32 %v676, %v746
        %v772 = vmul.f32 %v681, %v746
        %v773 = vmul.f32 %v686, %v746
        %v774 = vmul.f32 %v691, %v746
        %v775 = vmul.f32 %v696, %v746
        %v776 = vmul.f32 %v701, %v746
        %v777 = vmul.f32 %v706, %v746
        %v778 = vmul.f32 %v711, %v746
        %v779 = vsel %vm714, %v556, %v747
        %v780 = vsel %vm715, %v561, %v748
        %v781 = vsel %vm716, %v566, %v749
        %v782 = vsel %vm717, %v571, %v750
        %v783 = vsel %vm718, %v576, %v751
        %v784 = vsel %vm719, %v581, %v752
        %v785 = vsel %vm720, %v586, %v753
        %v786 = vsel %vm721, %v591, %v754
        %v787 = vsel %vm722, %v596, %v755
        %v788 = vsel %vm723, %v601, %v756
        %v789 = vsel %vm724, %v606, %v757
        %v790 = vsel %vm725, %v611, %v758
        %v791 = vsel %vm726, %v616, %v759
        %v792 = vsel %vm727, %v621, %v760
        %v793 = vsel %vm728, %v626, %v761
        %v794 = vsel %vm729, %v631, %v762
        %v795 = vsel %vm730, %v636, %v763
        %v796 = vsel %vm731, %v641, %v764
        %v797 = vsel %vm732, %v646, %v765
        %v798 = vsel %vm733, %v651, %v766
        %v799 = vsel %vm734, %v656, %v767
        %v800 = vsel %vm735, %v661, %v768
        %v801 = vsel %vm736, %v666, %v769
        %v802 = vsel %vm737, %v671, %v770
        %v803 = vsel %vm738, %v676, %v771
        %v804 = vsel %vm739, %v681, %v772
        %v805 = vsel %vm740, %v686, %v773
        %v806 = vsel %vm741, %v691, %v774
        %v807 = vsel %vm742, %v696, %v775
        %v808 = vsel %vm743, %v701, %v776
        %v809 = vsel %vm744, %v706, %v777
        %v810 = vsel %vm745, %v711, %v778
        %v812 = vlaneseq
        %v813 = vshrl.u32 %v812, 7
        %v814 = vsub.s32 0, %v813
        %v815 = vrot.slane %v350, %v814
        %817 = vmatprep.subr.mxu0 0.0
        %818 = vmatpush1.msra.mxu0 %v349
        %819 = vmatprep.subr.mxu0 0.0
        %820 = vmatpush1.msra.mxu0 %v348
        %821 = vmatprep.subr.mxu0 0.0
        %822 = vmatpush1.msra.mxu0 %v347
        %823 = vmatprep.subr.mxu0 0.0
        %824 = vmatpush1.msra.mxu0 %v346
        %825 = vmatprep.subr.mxu0 0.0
        %826 = vmatpush1.msra.mxu0 %v345
        %827 = vmatprep.subr.mxu0 0.0
        %828 = vmatpush1.msra.mxu0 %v344
        %829 = vmatprep.subr.mxu0 0.0
        %830 = vmatpush1.msra.mxu0 %v343
        %831 = vmatprep.subr.mxu0 0.0
        %832 = vmatpush1.msra.mxu0 %v342
        %833 = vmatprep.subr.mxu0 0.0
        %834 = vmatpush1.msra.mxu0 %v341
        %835 = vmatprep.subr.mxu0 0.0
        %836 = vmatpush1.msra.mxu0 %v340
        %837 = vmatprep.subr.mxu0 0.0
        %838 = vmatpush1.msra.mxu0 %v339
        %839 = vmatprep.subr.mxu0 0.0
        %840 = vmatpush1.msra.mxu0 %v338
        %841 = vmatprep.subr.mxu0 0.0
        %842 = vmatpush1.msra.mxu0 %v337
        %843 = vmatprep.subr.mxu0 0.0
        %844 = vmatpush1.msra.mxu0 %v336
        %845 = vmatprep.subr.mxu0 0.0
        %846 = vmatpush1.msra.mxu0 %v335
        %847 = vmatprep.subr.mxu0 0.0
        %848 = vmatpush1.msra.mxu0 %v334
        %849 = vmatprep.subr.mxu0 0.0
        %850 = vmatpush2.msra.mxu0 0.0
        %851 = vmatprep.subr.mxu0 0.0
        %852 = vmatpush2.msra.mxu0 0.0
        %853 = vmatprep.subr.mxu0 0.0
        %854 = vmatpush2.msra.mxu0 0.0
        %855 = vmatprep.subr.mxu0 0.0
        %856 = vmatpush2.msra.mxu0 0.0
        %857 = vmatprep.subr.mxu0 0.0
        %858 = vmatpush2.msra.mxu0 0.0
        %859 = vmatprep.subr.mxu0 0.0
        %860 = vmatpush2.msra.mxu0 0.0
        %861 = vmatprep.subr.mxu0 0.0
        %862 = vmatpush2.msra.mxu0 0.0
        %863 = vmatprep.subr.mxu0 0.0
        %864 = vmatpush2.msra.mxu0 0.0
        %865 = vmatprep.subr.mxu0 0.0
        %866 = vmatpush2.msra.mxu0 0.0
        %867 = vmatprep.subr.mxu0 0.0
        %868 = vmatpush2.msra.mxu0 0.0
        %869 = vmatprep.subr.mxu0 0.0
        %870 = vmatpush2.msra.mxu0 0.0
        %871 = vmatprep.subr.mxu0 0.0
        %872 = vmatpush2.msra.mxu0 0.0
        %873 = vmatprep.subr.mxu0 0.0
        %874 = vmatpush2.msra.mxu0 0.0
        %875 = vmatprep.subr.mxu0 0.0
        %876 = vmatpush2.msra.mxu0 0.0
        %877 = vmatprep.subr.mxu0 0.0
        %878 = vmatpush2.msra.mxu0 0.0
        %879 = vmatprep.subr.mxu0 0.0
        %880 = vmatpush2.msra.mxu0 0.0
        %881 = vmatprep.mubr.f32.mxu0 0.0
        %882 = vmatmul.mubr.f32.gmra.mxu0 %v779
        %v883 = vpop.f32.mrf.mxu0
        %v884 = vadd.f32 %v815, %v883
        %v885 = vpop.f32.mrf.mxu0
        %886 = vmatprep.mubr.f32.mxu0 0.0
        %887 = vmatmul.mubr.f32.gmra.mxu0 %v780
        %v888 = vpop.f32.mrf.mxu0
        %v889 = vadd.f32 %v815, %v888
        %v890 = vpop.f32.mrf.mxu0
        %891 = vmatprep.mubr.f32.mxu0 0.0
        %892 = vmatmul.mubr.f32.gmra.mxu0 %v781
        %v893 = vpop.f32.mrf.mxu0
        %v894 = vadd.f32 %v815, %v893
        %v895 = vpop.f32.mrf.mxu0
        %896 = vmatprep.mubr.f32.mxu0 0.0
        %897 = vmatmul.mubr.f32.gmra.mxu0 %v782
        %v898 = vpop.f32.mrf.mxu0
        %v899 = vadd.f32 %v815, %v898
        %v900 = vpop.f32.mrf.mxu0
        %901 = vmatprep.mubr.f32.mxu0 0.0
        %902 = vmatmul.mubr.f32.gmra.mxu0 %v783
        %v903 = vpop.f32.mrf.mxu0
        %v904 = vadd.f32 %v815, %v903
        %v905 = vpop.f32.mrf.mxu0
        %906 = vmatprep.mubr.f32.mxu0 0.0
        %907 = vmatmul.mubr.f32.gmra.mxu0 %v784
        %v908 = vpop.f32.mrf.mxu0
        %v909 = vadd.f32 %v815, %v908
        %v910 = vpop.f32.mrf.mxu0
        %911 = vmatprep.mubr.f32.mxu0 0.0
        %912 = vmatmul.mubr.f32.gmra.mxu0 %v785
        %v913 = vpop.f32.mrf.mxu0
        %v914 = vadd.f32 %v815, %v913
        %v915 = vpop.f32.mrf.mxu0
        %916 = vmatprep.mubr.f32.mxu0 0.0
        %917 = vmatmul.mubr.f32.gmra.mxu0 %v786
        %v918 = vpop.f32.mrf.mxu0
        %v919 = vadd.f32 %v815, %v918
        %v920 = vpop.f32.mrf.mxu0
        %921 = vmatprep.mubr.f32.mxu0 0.0
        %922 = vmatmul.mubr.f32.gmra.mxu0 %v787
        %v923 = vpop.f32.mrf.mxu0
        %v924 = vadd.f32 %v815, %v923
        %v925 = vpop.f32.mrf.mxu0
        %926 = vmatprep.mubr.f32.mxu0 0.0
        %927 = vmatmul.mubr.f32.gmra.mxu0 %v788
        %v928 = vpop.f32.mrf.mxu0
        %v929 = vadd.f32 %v815, %v928
        %v930 = vpop.f32.mrf.mxu0
        %931 = vmatprep.mubr.f32.mxu0 0.0
        %932 = vmatmul.mubr.f32.gmra.mxu0 %v789
        %v933 = vpop.f32.mrf.mxu0
        %v934 = vadd.f32 %v815, %v933
        %v935 = vpop.f32.mrf.mxu0
        %936 = vmatprep.mubr.f32.mxu0 0.0
        %937 = vmatmul.mubr.f32.gmra.mxu0 %v790
        %v938 = vpop.f32.mrf.mxu0
        %v939 = vadd.f32 %v815, %v938
        %v940 = vpop.f32.mrf.mxu0
        %941 = vmatprep.mubr.f32.mxu0 0.0
        %942 = vmatmul.mubr.f32.gmra.mxu0 %v791
        %v943 = vpop.f32.mrf.mxu0
        %v944 = vadd.f32 %v815, %v943
        %v945 = vpop.f32.mrf.mxu0
        %946 = vmatprep.mubr.f32.mxu0 0.0
        %947 = vmatmul.mubr.f32.gmra.mxu0 %v792
        %v948 = vpop.f32.mrf.mxu0
        %v949 = vadd.f32 %v815, %v948
        %v950 = vpop.f32.mrf.mxu0
        %951 = vmatprep.mubr.f32.mxu0 0.0
        %952 = vmatmul.mubr.f32.gmra.mxu0 %v793
        %v953 = vpop.f32.mrf.mxu0
        %v954 = vadd.f32 %v815, %v953
        %v955 = vpop.f32.mrf.mxu0
        %956 = vmatprep.mubr.f32.mxu0 0.0
        %957 = vmatmul.mubr.f32.gmra.mxu0 %v794
        %v958 = vpop.f32.mrf.mxu0
        %v959 = vadd.f32 %v815, %v958
        %v960 = vpop.f32.mrf.mxu0
        %961 = vmatprep.mubr.f32.mxu0 0.0
        %962 = vmatmul.mubr.f32.gmra.mxu0 %v795
        %v963 = vpop.f32.mrf.mxu0
        %v964 = vadd.f32 %v815, %v963
        %v965 = vpop.f32.mrf.mxu0
        %966 = vmatprep.mubr.f32.mxu0 0.0
        %967 = vmatmul.mubr.f32.gmra.mxu0 %v796
        %v968 = vpop.f32.mrf.mxu0
        %v969 = vadd.f32 %v815, %v968
        %v970 = vpop.f32.mrf.mxu0
        %971 = vmatprep.mubr.f32.mxu0 0.0
        %972 = vmatmul.mubr.f32.gmra.mxu0 %v797
        %v973 = vpop.f32.mrf.mxu0
        %v974 = vadd.f32 %v815, %v973
        %v975 = vpop.f32.mrf.mxu0
        %976 = vmatprep.mubr.f32.mxu0 0.0
        %977 = vmatmul.mubr.f32.gmra.mxu0 %v798
        %v978 = vpop.f32.mrf.mxu0
        %v979 = vadd.f32 %v815, %v978
        %v980 = vpop.f32.mrf.mxu0
        %981 = vmatprep.mubr.f32.mxu0 0.0
        %982 = vmatmul.mubr.f32.gmra.mxu0 %v799
        %v983 = vpop.f32.mrf.mxu0
        %v984 = vadd.f32 %v815, %v983
        %v985 = vpop.f32.mrf.mxu0
        %986 = vmatprep.mubr.f32.mxu0 0.0
        %987 = vmatmul.mubr.f32.gmra.mxu0 %v800
        %v988 = vpop.f32.mrf.mxu0
        %v989 = vadd.f32 %v815, %v988
        %v990 = vpop.f32.mrf.mxu0
        %991 = vmatprep.mubr.f32.mxu0 0.0
        %992 = vmatmul.mubr.f32.gmra.mxu0 %v801
        %v993 = vpop.f32.mrf.mxu0
        %v994 = vadd.f32 %v815, %v993
        %v995 = vpop.f32.mrf.mxu0
        %996 = vmatprep.mubr.f32.mxu0 0.0
        %997 = vmatmul.mubr.f32.gmra.mxu0 %v802
        %v998 = vpop.f32.mrf.mxu0
        %v999 = vadd.f32 %v815, %v998
        %v1000 = vpop.f32.mrf.mxu0
        %1001 = vmatprep.mubr.f32.mxu0 0.0
        %1002 = vmatmul.mubr.f32.gmra.mxu0 %v803
        %v1003 = vpop.f32.mrf.mxu0
        %v1004 = vadd.f32 %v815, %v1003
        %v1005 = vpop.f32.mrf.mxu0
        %1006 = vmatprep.mubr.f32.mxu0 0.0
        %1007 = vmatmul.mubr.f32.gmra.mxu0 %v804
        %v1008 = vpop.f32.mrf.mxu0
        %v1009 = vadd.f32 %v815, %v1008
        %v1010 = vpop.f32.mrf.mxu0
        %1011 = vmatprep.mubr.f32.mxu0 0.0
        %1012 = vmatmul.mubr.f32.gmra.mxu0 %v805
        %v1013 = vpop.f32.mrf.mxu0
        %v1014 = vadd.f32 %v815, %v1013
        %v1015 = vpop.f32.mrf.mxu0
        %1016 = vmatprep.mubr.f32.mxu0 0.0
        %1017 = vmatmul.mubr.f32.gmra.mxu0 %v806
        %v1018 = vpop.f32.mrf.mxu0
        %v1019 = vadd.f32 %v815, %v1018
        %v1020 = vpop.f32.mrf.mxu0
        %1021 = vmatprep.mubr.f32.mxu0 0.0
        %1022 = vmatmul.mubr.f32.gmra.mxu0 %v807
        %v1023 = vpop.f32.mrf.mxu0
        %v1024 = vadd.f32 %v815, %v1023
        %v1025 = vpop.f32.mrf.mxu0
        %1026 = vmatprep.mubr.f32.mxu0 0.0
        %1027 = vmatmul.mubr.f32.gmra.mxu0 %v808
        %v1028 = vpop.f32.mrf.mxu0
        %v1029 = vadd.f32 %v815, %v1028
        %v1030 = vpop.f32.mrf.mxu0
        %1031 = vmatprep.mubr.f32.mxu0 0.0
        %1032 = vmatmul.mubr.f32.gmra.mxu0 %v809
        %v1033 = vpop.f32.mrf.mxu0
        %v1034 = vadd.f32 %v815, %v1033
        %v1035 = vpop.f32.mrf.mxu0
        %1036 = vmatprep.mubr.f32.mxu0 0.0
        %1037 = vmatmul.mubr.f32.gmra.mxu0 %v810
        %v1038 = vpop.f32.mrf.mxu0
        %v1039 = vadd.f32 %v815, %v1038
        %v1040 = vpop.f32.mrf.mxu0
        %1041 = vdwg.mxu0
        %v1042 = vmax.f32 %v884, 0.0
        %v1043 = vmax.f32 %v889, 0.0
        %v1044 = vmax.f32 %v894, 0.0
        %v1045 = vmax.f32 %v899, 0.0
        %v1046 = vmax.f32 %v904, 0.0
        %v1047 = vmax.f32 %v909, 0.0
        %v1048 = vmax.f32 %v914, 0.0
        %v1049 = vmax.f32 %v919, 0.0
        %v1050 = vmax.f32 %v924, 0.0
        %v1051 = vmax.f32 %v929, 0.0
        %v1052 = vmax.f32 %v934, 0.0
        %v1053 = vmax.f32 %v939, 0.0
        %v1054 = vmax.f32 %v944, 0.0
        %v1055 = vmax.f32 %v949, 0.0
        %v1056 = vmax.f32 %v954, 0.0
        %v1057 = vmax.f32 %v959, 0.0
        %v1058 = vmax.f32 %v964, 0.0
        %v1059 = vmax.f32 %v969, 0.0
        %v1060 = vmax.f32 %v974, 0.0
        %v1061 = vmax.f32 %v979, 0.0
        %v1062 = vmax.f32 %v984, 0.0
        %v1063 = vmax.f32 %v989, 0.0
        %v1064 = vmax.f32 %v994, 0.0
        %v1065 = vmax.f32 %v999, 0.0
        %v1066 = vmax.f32 %v1004, 0.0
        %v1067 = vmax.f32 %v1009, 0.0
        %v1068 = vmax.f32 %v1014, 0.0
        %v1069 = vmax.f32 %v1019, 0.0
        %v1070 = vmax.f32 %v1024, 0.0
        %v1071 = vmax.f32 %v1029, 0.0
        %v1072 = vmax.f32 %v1034, 0.0
        %v1073 = vmax.f32 %v1039, 0.0
        %v1074 = vstv %s353
        %v1076 = vsel %vm392, %v351, 0
        %v1079 = vsel %vm392, %v1042, 0
        %v1082 = vsel %vm392, %v1043, 0
        %v1085 = vsel %vm392, %v1044, 0
        %v1088 = vsel %vm392, %v1045, 0
        %v1091 = vsel %vm392, %v1046, 0
        %v1094 = vsel %vm392, %v1047, 0
        %v1097 = vsel %vm392, %v1048, 0
        %v1100 = vsel %vm392, %v1049, 0
        %v1103 = vsel %vm392, %v1050, 0
        %v1106 = vsel %vm392, %v1051, 0
        %v1109 = vsel %vm392, %v1052, 0
        %v1112 = vsel %vm392, %v1053, 0
        %v1115 = vsel %vm392, %v1054, 0
        %v1118 = vsel %vm392, %v1055, 0
        %v1121 = vsel %vm392, %v1056, 0
        %v1124 = vsel %vm392, %v1057, 0
        %v1127 = vsel %vm392, %v1058, 0
        %v1130 = vsel %vm392, %v1059, 0
        %v1133 = vsel %vm392, %v1060, 0
        %v1136 = vsel %vm392, %v1061, 0
        %v1139 = vsel %vm392, %v1062, 0
        %v1142 = vsel %vm392, %v1063, 0
        %v1145 = vsel %vm392, %v1064, 0
        %v1148 = vsel %vm392, %v1065, 0
        %v1151 = vsel %vm392, %v1066, 0
        %v1154 = vsel %vm392, %v1067, 0
        %v1157 = vsel %vm392, %v1068, 0
        %v1160 = vsel %vm392, %v1069, 0
        %v1163 = vsel %vm392, %v1070, 0
        %v1166 = vsel %vm392, %v1071, 0
        %v1169 = vsel %vm392, %v1072, 0
        %v1172 = vsel %vm392, %v1073, 0
        %1174 = vmatprep.subr.mxu0 0.0
        %1175 = vmatpush1.xpose.msra.mxu0 %v1124
        %1176 = vmatprep.subr.mxu0 0.0
        %1177 = vmatpush1.xpose.msra.mxu0 %v1121
        %1178 = vmatprep.subr.mxu0 0.0
        %1179 = vmatpush1.xpose.msra.mxu0 %v1118
        %1180 = vmatprep.subr.mxu0 0.0
        %1181 = vmatpush1.xpose.msra.mxu0 %v1115
        %1182 = vmatprep.subr.mxu0 0.0
        %1183 = vmatpush1.xpose.msra.mxu0 %v1112
        %1184 = vmatprep.subr.mxu0 0.0
        %1185 = vmatpush1.xpose.msra.mxu0 %v1109
        %1186 = vmatprep.subr.mxu0 0.0
        %1187 = vmatpush1.xpose.msra.mxu0 %v1106
        %1188 = vmatprep.subr.mxu0 0.0
        %1189 = vmatpush1.xpose.msra.mxu0 %v1103
        %1190 = vmatprep.subr.mxu0 0.0
        %1191 = vmatpush1.xpose.msra.mxu0 %v1100
        %1192 = vmatprep.subr.mxu0 0.0
        %1193 = vmatpush1.xpose.msra.mxu0 %v1097
        %1194 = vmatprep.subr.mxu0 0.0
        %1195 = vmatpush1.xpose.msra.mxu0 %v1094
        %1196 = vmatprep.subr.mxu0 0.0
        %1197 = vmatpush1.xpose.msra.mxu0 %v1091
        %1198 = vmatprep.subr.mxu0 0.0
        %1199 = vmatpush1.xpose.msra.mxu0 %v1088
        %1200 = vmatprep.subr.mxu0 0.0
        %1201 = vmatpush1.xpose.msra.mxu0 %v1085
        %1202 = vmatprep.subr.mxu0 0.0
        %1203 = vmatpush1.xpose.msra.mxu0 %v1082
        %1204 = vmatprep.subr.mxu0 0.0
        %1205 = vmatpush1.xpose.msra.mxu0 %v1079
        %1206 = vmatprep.subr.mxu0 0.0
        %1207 = vmatpush2.xpose.msra.mxu0 %v1172
        %1208 = vmatprep.subr.mxu0 0.0
        %1209 = vmatpush2.xpose.msra.mxu0 %v1169
        %1210 = vmatprep.subr.mxu0 0.0
        %1211 = vmatpush2.xpose.msra.mxu0 %v1166
        %1212 = vmatprep.subr.mxu0 0.0
        %1213 = vmatpush2.xpose.msra.mxu0 %v1163
        %1214 = vmatprep.subr.mxu0 0.0
        %1215 = vmatpush2.xpose.msra.mxu0 %v1160
        %1216 = vmatprep.subr.mxu0 0.0
        %1217 = vmatpush2.xpose.msra.mxu0 %v1157
        %1218 = vmatprep.subr.mxu0 0.0
        %1219 = vmatpush2.xpose.msra.mxu0 %v1154
        %1220 = vmatprep.subr.mxu0 0.0
        %1221 = vmatpush2.xpose.msra.mxu0 %v1151
        %1222 = vmatprep.subr.mxu0 0.0
        %1223 = vmatpush2.xpose.msra.mxu0 %v1148
        %1224 = vmatprep.subr.mxu0 0.0
        %1225 = vmatpush2.xpose.msra.mxu0 %v1145
        %1226 = vmatprep.subr.mxu0 0.0
        %1227 = vmatpush2.xpose.msra.mxu0 %v1142
        %1228 = vmatprep.subr.mxu0 0.0
        %1229 = vmatpush2.xpose.msra.mxu0 %v1139
        %1230 = vmatprep.subr.mxu0 0.0
        %1231 = vmatpush2.xpose.msra.mxu0 %v1136
        %1232 = vmatprep.subr.mxu0 0.0
        %1233 = vmatpush2.xpose.msra.mxu0 %v1133
        %1234 = vmatprep.subr.mxu0 0.0
        %1235 = vmatpush2.xpose.msra.mxu0 %v1130
        %1236 = vmatprep.subr.mxu0 0.0
        %1237 = vmatpush2.xpose.msra.mxu0 %v1127
        %1238 = vmatprep.mubr.f32.mxu0 0.0
        %1239 = vmatmul.mubr.f32.gmra.mxu0 %v1076
        %v1240 = vpop.f32.mrf.mxu0
        %v1241 = vadd.f32 %v1074, %v1240
        %v1242 = vpop.f32.mrf.mxu0
        %v1243 = vadd.f32 %v1074, %v1242
        %1244 = vdwg.mxu0
        %v1245 = vmax.f32 %v1241, 0.0
        %v1246 = vmax.f32 %v1243, 0.0
        %v1249 = vcombine.low %v1245, %v1246
        %v1251 = vunpack.c.l.s4 1966171168
        %v1252 = vunpack.c.0.s8 %v1251
        %v1253 = vlaneseq
        %v1254 = vshrl.u32 %v1253, 7
        %v1255 = vsub.s32 %v1252, %v1254
        %v1256 = vrot.slane %v1249, %v1255
        %v1258 = vunpack.c.l.s4 1966171168
        %v1259 = vunpack.c.0.s8 %v1258
        %v1260 = vlaneseq
        %v1261 = vshrl.u32 %v1260, 7
        %v1262 = vsub.s32 %v1259, %v1261
        %v1263 = vrot.slane %v1256, %v1262
        %v1265 = vlaneseq
        %vm1266 = vcmp.ge.s32.totalorder %v1265, 0
        %vm1267 = vcmp.lt.s32.totalorder %v1265, 256
        %vm1268 = vmand %vm1266, %vm1267
        %1269 = vst.msk [vmem:[%s313] sm:$0x3] %vm1268, %v1263
        %s1270 = sand.u32 %s205, 1
        %s1271 = scalar_lea.sflag [#allocation5], %s1270
        %s1272 = sand.u32 %s205, 1
        %s1273 = smul.addr %s1272, 2
        %s1274 = scalar_lea.vmem [#allocation4], %s1273
        // Predicated region
        $region53: #{tpu_custom_call.1} parent=51 // pred_check
          %p1275 = pneg %p215
        $region54: #{tpu_custom_call.1} parent=51 // pred_check_branch
          %1277 = sbr.rel (%p1275) target = $region56
        $region55: #{tpu_custom_call.1} parent=51 // pred_region
          %s1278 = smul.u32 2, %s24
          %s1280 = ssub.s32 32, 32
          %1281 = vsyncadd %s1271, %s1280
          %s1282 = smul.addr %s1278, 16
          %s1283 = scalar_lea.hbm %s8, %s1282
          %s1285 = sshll.u32 %s1274, 4
          %s1286 = int_to_ptr.vmem [resolvable:$true] %s1285
          %1288 = dma.vmem_to_hbm [thread:$0]  %s1286, 32, %s1283, %s1271
        $region56: #{tpu_custom_call.1} parent=51 // pred_fallthru
          _
      $region52: #{tpu_custom_call.1} parent=5 // pred_fallthru
        _
      %p1289 = scmp.le.s32.totalorder 2, %s19
      // Predicated region
      $region57: #{tpu_custom_call.1} parent=5 // pred_check
        %p1290 = pneg %p1289
      $region58: #{tpu_custom_call.1} parent=5 // pred_check_branch
        %1292 = sbr.rel (%p1290) target = $region60
      $region59: #{tpu_custom_call.1} parent=5 // pred_region
        %s1293 = ssub.s32 %s19, 2
        // Predicated region
        $region61: #{tpu_custom_call.1} parent=59 // pred_check
          %p1294 = pneg %p221
        $region62: #{tpu_custom_call.1} parent=59 // pred_check_branch
          %1296 = sbr.rel (%p1294) target = $region64
        $region63: #{tpu_custom_call.1} parent=59 // pred_region
          %s1297 = sand.u32 %s206, 1
          %s1298 = scalar_lea.sflag [#allocation5], %s1297
          %s1299 = sand.u32 %s206, 1
          %s1300 = smul.addr %s1299, 2
          %s1301 = scalar_lea.vmem [#allocation4], %s1300
          %1302 = dma.done %s1298, 32
        $region64: #{tpu_custom_call.1} parent=59 // pred_fallthru
          _
      $region60: #{tpu_custom_call.1} parent=5 // pred_fallthru
        _
    $region6: #{tpu_custom_call.1} parent=1 // loop_footer
      %s23 = sadd.s32 1, %s19
    $region7: #{tpu_custom_call.1} parent=1 // loop_footer_branch
      %18 = sbr.rel target = $region3
    $region8: #{tpu_custom_call.1} parent=1 // loop_exit
      _
    %1303 = vsyncpa [#allocation5], 1
    %s1304 = scalar_lea.sflag [#allocation5], 1
    %1305 = vsyncpa %s1304, 1

</llo_original>
